<compile_context>
chip_gen: v7x
topology: tpu7x:2x2x1
jax: 0.10.0
libtpu: 0.0.40
codegen_flags: <defaults>
</compile_context>

<pallas_src>
import jax
import jax.numpy as jnp
from jax.experimental import pallas as pl
from jax.experimental.pallas import tpu as pltpu


_VMEM_LIMIT_BYTES = 64 * 1024 * 1024
_SINGLE_K_MAX = 2048  # collapse the K axis whenever the padded depth is <= this


def _round_up(v, m):
    return (v + m - 1) // m * m


def _largest_divisor(dim, candidates):
    for c in candidates:
        if dim % c == 0:
            return c
    return None


# ----------------------------- kernels ---------------------------------------

def _resnet_kernel_single_k(x_ref, w_ref, b_ref, o_ref):
    """Fused single-K-step kernel: whole reduction in one MXU dot.

    x_ref : (tm, Kp)  X row slab (also provides the residual tile)
    w_ref : (Kp, tn)  W column slab
    b_ref : (1,  Np)  full bias, resident (fetched once)
    o_ref : (tm, tn)  output tile
    """
    j = pl.program_id(1)
    tn = o_ref.shape[-1]
    off = pl.multiple_of(j * tn, 128)

    acc = jnp.dot(x_ref[...], w_ref[...], preferred_element_type=jnp.float32)
    y = jnp.maximum(acc + b_ref[:, pl.ds(off, tn)], 0.0)            # relu(XW+b)
    # Square matmul (Kp == Np): the residual tile X[i, j] is a lane-aligned
    # slice of the LHS slab already in VMEM -> no second HBM read of X.
    xres = x_ref[:, pl.ds(off, tn)].astype(jnp.float32)
    o_ref[...] = jnp.maximum(y + xres, 0.0).astype(o_ref.dtype)     # relu(y+X)


def _resnet_kernel_ktiled(x_ref, w_ref, b_ref, o_ref, acc_ref, xres_ref):
    """K-tiled fallback with an f32 accumulator (large depth only).

    Requires tk == tn and Kp == Np: the LHS tile at k == j equals the residual
    tile X[i, j]; it is stashed in VMEM instead of being re-read from HBM.
    """
    j = pl.program_id(1)
    k = pl.program_id(2)

    @pl.when(k == 0)
    def _():
        acc_ref[...] = jnp.zeros_like(acc_ref)

    @pl.when(k == j)
    def _():
        xres_ref[...] = x_ref[...]

    acc_ref[...] += jnp.dot(x_ref[...], w_ref[...],
                            preferred_element_type=jnp.float32)

    @pl.when(k == pl.num_programs(2) - 1)
    def _():
        tn = o_ref.shape[-1]
        off = pl.multiple_of(j * tn, 128)
        y = jnp.maximum(acc_ref[...] + b_ref[:, pl.ds(off, tn)], 0.0)
        y = jnp.maximum(y + xres_ref[...].astype(jnp.float32), 0.0)
        o_ref[...] = y.astype(o_ref.dtype)


# ----------------------------- pallas_call wrappers ---------------------------

def _resnet_call_padded(xp, wp, bp):
    """Core fused call on padded operands.  xp:(Mp,Kp) wp:(Kp,Np) bp:(1,Np)."""
    Mp, Kp = xp.shape
    Kw, Np = wp.shape
    assert Kp == Kw and Kp == Np, "residual add requires a square (padded) W"
    assert bp.shape == (1, Np)

    # M tile: prefer one resident row slab; otherwise the largest divisor.
    tm = Mp if Mp <= 512 else _largest_divisor(Mp, (512, 256, 128, 64, 32, 16, 8))

    if Kp <= _SINGLE_K_MAX:
        # ---- variant A: collapse the K axis (one dot per output tile) ------
        if Np <= 512:
            tn = Np
            # Keep >=2 blocks on a parallel axis for dual-TensorCore chips.
            if Mp // tm == 1 and Np >= 256 and (Np // 2) % 128 == 0:
                tn = Np // 2
        else:
            tn = _largest_divisor(Np, (512, 256, 128))
        grid = (Mp // tm, Np // tn)
        return pl.pallas_call(
            _resnet_kernel_single_k,
            out_shape=jax.ShapeDtypeStruct((Mp, Np), xp.dtype),
            grid_spec=pltpu.PrefetchScalarGridSpec(
                num_scalar_prefetch=0,
                grid=grid,
                in_specs=[
                    pl.BlockSpec((tm, Kp), lambda i, j: (i, 0)),   # X row slab
                    pl.BlockSpec((Kp, tn), lambda i, j: (0, j)),   # W col slab
                    pl.BlockSpec((1, Np), lambda i, j: (0, 0)),    # bias (resident)
                ],
                out_specs=pl.BlockSpec((tm, tn), lambda i, j: (i, j)),
            ),
            compiler_params=pltpu.CompilerParams(
                dimension_semantics=("parallel", "parallel"),
                vmem_limit_bytes=_VMEM_LIMIT_BYTES,
            ),
        )(xp, wp, bp)

    # ---- variant B: K-tiled accumulation (large depth) ---------------------
    tn = tk = _largest_divisor(Np, (512, 256, 128))
    grid = (Mp // tm, Np // tn, Kp // tk)
    return pl.pallas_call(
        _resnet_kernel_ktiled,
        out_shape=jax.ShapeDtypeStruct((Mp, Np), xp.dtype),
        grid_spec=pltpu.PrefetchScalarGridSpec(
            num_scalar_prefetch=0,
            grid=grid,
            in_specs=[
                pl.BlockSpec((tm, tk), lambda i, j, k: (i, k)),    # X (matmul LHS)
                pl.BlockSpec((tk, tn), lambda i, j, k: (k, j)),    # W
                pl.BlockSpec((1, Np), lambda i, j, k: (0, 0)),     # bias (resident)
            ],
            out_specs=pl.BlockSpec((tm, tn), lambda i, j, k: (i, j)),
            scratch_shapes=[
                pltpu.VMEM((tm, tn), jnp.float32),   # f32 accumulator
                pltpu.VMEM((tm, tn), xp.dtype),      # residual tile stash (k == j)
            ],
        ),
        compiler_params=pltpu.CompilerParams(
            dimension_semantics=("parallel", "parallel", "arbitrary"),
            vmem_limit_bytes=_VMEM_LIMIT_BYTES,
        ),
    )(xp, wp, bp)


def _pad_params(w, b):
    """Pad W to (Np, Np) and b to (1, Np), Np a multiple of 128 (done once)."""
    K, N = w.shape
    assert K == N, "resnet residual add requires num_input == num_output"
    Np = _round_up(N, 128)
    wp = w if Np == N else jnp.pad(w, ((0, Np - K), (0, Np - N)))
    bp = (b if Np == N else jnp.pad(b, (0, Np - N))).reshape(1, Np)
    return wp, bp


def _pad_input(x, Kp):
    """Pad X rows to a multiple of 8 and depth to Kp (no 128-row waste)."""
    M, K = x.shape
    Mp = _round_up(max(M, 1), 8)
    if Mp == M and Kp == K:
        return x, M
    return jnp.pad(x, ((0, Mp - M), (0, Kp - K))), M


def resnet_forward_pallas(x, w, b):
    """out = relu(relu(x @ w + b) + x), fused in one Pallas TPU kernel."""
    K, N = w.shape
    assert x.shape[1] == K and K == N
    wp, bp = _pad_params(w, b)
    xp, M = _pad_input(x, wp.shape[0])
    out = _resnet_call_padded(xp, wp, bp)
    return out[:M, :N]


class ResnetPallas:
    """JAX/Pallas port of the PyTorch `resnet` (mylinear + relu + residual)."""

    def __init__(self, num_input, num_output, key=None):
        assert num_input == num_output, (
            "resnet residual add requires num_input == num_output")
        if key is None:
            key = jax.random.PRNGKey(0)
        # mylinear init: W ~ Normal(0, 0.01), b = zeros.
        self.w = 0.01 * jax.random.normal(key, (num_input, num_output),
                                          jnp.float32)
        self.b = jnp.zeros((num_output,), jnp.float32)
        # Parameter padding hoisted out of the forward path (static params).
        self._wp, self._bp = _pad_params(self.w, self.b)
        self._n = num_output

    def __call__(self, x):
        xp, M = _pad_input(x, self._wp.shape[0])
        out = _resnet_call_padded(xp, self._wp, self._bp)
        return out[:M, :self._n]


def _reference(x, w, b):
    y = jnp.maximum(x @ w + b[None, :], 0.0)
    return jnp.maximum(y + x, 0.0)


if __name__ == "__main__":
    key = jax.random.PRNGKey(0)
    k_x, k_p, k_x2 = jax.random.split(key, 3)

    # Module-consistent depth (num_input = 504; square so the residual is
    # valid), small batch.  Exercises the padding path (504 -> 512).
    B, D = 4, 504
    x = jax.random.normal(k_x, (B, D), jnp.float32)
    layer = ResnetPallas(D, D, key=k_p)
    out = jax.block_until_ready(layer(x))
    ref = _reference(x, layer.w, layer.b)
    assert out.shape == (B, D), out.shape
    assert jnp.max(jnp.abs(out - ref)) < 1e-4, "mismatch vs reference"

    # Tile-aligned shapes (no padding path), exercises the 2-way N split.
    B2, D2 = 16, 256
    x2 = jax.random.normal(k_x2, (B2, D2), jnp.float32)
    layer2 = ResnetPallas(D2, D2, key=k_p)
    out2 = jax.block_until_ready(layer2(x2))
    ref2 = _reference(x2, layer2.w, layer2.b)
    assert out2.shape == (B2, D2), out2.shape
    assert jnp.max(jnp.abs(out2 - ref2)) < 1e-4, "mismatch vs reference (aligned)"

    print("KERNEL_OK")
</pallas_src>

<mosaic_0001>
module attributes {stable_mosaic.version = 11 : i64} {
  func.func @_resnet_kernel_single_k(%arg0: i32, %arg1: i32, %arg2: memref<8x512xf32, #tpu.memory_space<vmem>>, %arg3: memref<512x256xf32, #tpu.memory_space<vmem>>, %arg4: memref<1x512xf32, #tpu.memory_space<vmem>>, %arg5: memref<8x256xf32, #tpu.memory_space<vmem>>) attributes {dimension_semantics = [#tpu.dimension_semantics<parallel>, #tpu.dimension_semantics<parallel>], iteration_bounds = array<i64: 1, 2>, scalar_prefetch = 0 : i64, scratch_operands = 0 : i64, tpu.core_type = #tpu.core_type<tc>, window_params = [{transform_indices = @transform_0, window_bounds = array<i64: 8, 512>}, {transform_indices = @transform_1, window_bounds = array<i64: 512, 256>}, {pipeline_mode = #tpu.pipeline_mode<synchronous>, transform_indices = @transform_2, window_bounds = array<i64: 1, 512>}, {transform_indices = @transform_3, window_bounds = array<i64: 8, 256>}]} {
    %c256_i32 = arith.constant 256 : i32
    %0 = arith.muli %arg1, %c256_i32 : i32
    %1 = tpu.assume_multiple %0, 128 : i32
    %c0 = arith.constant 0 : index
    %c0_0 = arith.constant 0 : index
    %2 = vector.load %arg2[%c0, %c0_0] : memref<8x512xf32, #tpu.memory_space<vmem>>, vector<8x512xf32>
    %c0_1 = arith.constant 0 : index
    %c0_2 = arith.constant 0 : index
    %3 = vector.load %arg3[%c0_1, %c0_2] : memref<512x256xf32, #tpu.memory_space<vmem>>, vector<512x256xf32>
    %cst = arith.constant dense<0.000000e+00> : vector<8x256xf32>
    %4 = tpu.matmul %2, %3, %cst {dimension_numbers = #tpu.dot_dimension_numbers<[1], [0], [0], [1], [0, 0, 1, 1], [], []>} : vector<8x512xf32>, vector<512x256xf32>, vector<8x256xf32> -> vector<8x256xf32>
    %c0_3 = arith.constant 0 : index
    %5 = arith.index_cast %1 : i32 to index
    %6 = vector.load %arg4[%c0_3, %5] : memref<1x512xf32, #tpu.memory_space<vmem>>, vector<1x256xf32>
    %7 = vector.broadcast %6 : vector<1x256xf32> to vector<8x256xf32>
    %8 = arith.addf %4, %7 : vector<8x256xf32>
    %cst_4 = arith.constant 0.000000e+00 : f32
    %9 = vector.broadcast %cst_4 : f32 to vector<8x256xf32>
    %10 = arith.maximumf %8, %9 : vector<8x256xf32>
    %c0_5 = arith.constant 0 : index
    %11 = arith.index_cast %1 : i32 to index
    %12 = vector.load %arg2[%c0_5, %11] : memref<8x512xf32, #tpu.memory_space<vmem>>, vector<8x256xf32>
    %13 = arith.addf %10, %12 : vector<8x256xf32>
    %cst_6 = arith.constant 0.000000e+00 : f32
    %14 = vector.broadcast %cst_6 : f32 to vector<8x256xf32>
    %15 = arith.maximumf %13, %14 : vector<8x256xf32>
    %c0_7 = arith.constant 0 : index
    %c0_8 = arith.constant 0 : index
    %16 = vector.load %arg5[%c0_7, %c0_8] : memref<8x256xf32, #tpu.memory_space<vmem>>, vector<8x256xf32>
    tpu.vector_store %arg5[%c0_7, %c0_8], %15 {strides = array<i32>} : memref<8x256xf32, #tpu.memory_space<vmem>>, vector<8x256xf32>,
    return
  }
  func.func @transform_0(%arg0: i32, %arg1: i32) -> (i32, i32) {
    %c0_i32 = arith.constant 0 : i32
    %c0_i32_0 = arith.constant 0 : i32
    return %arg0, %c0_i32 : i32, i32
  }
  func.func @transform_1(%arg0: i32, %arg1: i32) -> (i32, i32) {
    %c0_i32 = arith.constant 0 : i32
    %c0_i32_0 = arith.constant 0 : i32
    return %c0_i32, %arg1 : i32, i32
  }
  func.func @transform_2(%arg0: i32, %arg1: i32) -> (i32, i32) {
    %c0_i32 = arith.constant 0 : i32
    %c0_i32_0 = arith.constant 0 : i32
    %c0_i32_1 = arith.constant 0 : i32
    return %c0_i32, %c0_i32_0 : i32, i32
  }
  func.func @transform_3(%arg0: i32, %arg1: i32) -> (i32, i32) {
    %c0_i32 = arith.constant 0 : i32
    return %arg0, %arg1 : i32, i32
  }
}

</mosaic_0001>

<llo_original>
// kernel: tpu_custom_call.1
$region0: #{tpu_custom_call.1}
  #allocation0 [shape = 'u32[]', space=smem, size = 0x4, offset = 0x4, fixed_abs, tag = 'smem constant byte address 0x4 - core index']
  #allocation1 [shape = 'u32[144,128]{1,0:T(1,128)}', space=vmem, size = 0x12000, scoped, tag = 'internal scratch']
  %s0 = inlined_call_operand.hbm [shape: f32[8,512], index: 0, kind: input, shape index: {}]
  %s1 = inlined_call_operand.hbm [shape: f32[512,512], index: 1, kind: input, shape index: {}]
  %s2 = inlined_call_operand.hbm [shape: f32[1,512], index: 2, kind: input, shape index: {}]
  %s3 = inlined_call_operand.hbm [shape: f32[8,512], index: 3, kind: output, shape index: {}]
  %s4 = sld [smem:[#allocation0]]
  $region57: #{tpu_custom_call.1} parent=0
    _
  %s6 = ssub.s32 1, %s4
  %s7 = scalar_select 0, %s6, %s4
  $region1: #{tpu_custom_call.1} parent=0
    #allocation2 [shape = 'u8[16384]{0}', space=vmem, size = 0x4000, scoped, tag = 'input window, operand 0, single buffered']
    #allocation3 [shape = 's32[2]{0}', space=sflag, size = 0x8, scoped, tag = 'scoped memory for tpu_custom_call.1']
    #allocation4 [shape = 's32[2]{0}', space=sflag, size = 0x8, scoped, tag = 'scoped memory for tpu_custom_call.1']
    #allocation5 [shape = 'u8[1048576]{0}', space=vmem, size = 0x100000, scoped, tag = 'input window, operand 1']
    #allocation6 [shape = 's32[2]{0}', space=sflag, size = 0x8, scoped, tag = 'scoped memory for tpu_custom_call.1']
    #allocation7 [shape = 'u8[2048]{0}', space=vmem, size = 0x800, scoped, tag = 'input window, operand 2, single buffered']
    #allocation8 [shape = 'u8[16384]{0}', space=vmem, size = 0x4000, scoped, tag = 'output window, operand 0']
    %8 = vsyncpa [#allocation3], 0
    %9 = vsyncpa [#allocation6], 0
    %s10 = scalar_lea.sflag [#allocation6], 1
    %11 = vsyncpa %s10, 0
    %12 = vsyncpa [#allocation4], 0
    %s13 = scalar_lea.sflag [#allocation4], 1
    %14 = vsyncpa %s13, 0
    loop: start=0, step=1, limit=4
    $region2: #{tpu_custom_call.1} parent=1 // loop_pre_header
      _
    $region3: #{tpu_custom_call.1} parent=1 // loop_header
      %s16 = sphi 0, %s20
      %p17 = scmp.ge.s32.totalorder %s16, 4
      %s23 = sphi 0, %s35
      %s24 = sphi 0, %s31
      %s25 = sphi 0, %s23
      %s26 = sphi 0, %s24
      %s27 = sphi 0, %s25
      %s28 = sphi 0, %s26
      %s38 = sphi 0, %s40
      %s41 = sphi 0, %s38
      %s42 = sphi 0, %s41
      %s58 = sphi 0, %s42
      %s64 = sphi 0, %s66
      %s67 = sphi 0, %s64
      %s68 = sphi 0, %s67
      %s84 = sphi 0, %s68
      %s88 = sphi 0, %s88
      %s90 = sphi 0, %s88
      %s91 = sphi 0, %s90
      %s105 = sphi 0, %s91
      %s113 = sphi 0, %s115
      %s116 = sphi 0, %s113
      %s117 = sphi 0, %s116
      %s133 = sphi 0, %s117
    $region4: #{tpu_custom_call.1} parent=1 // loop_header_branch
      %19 = sbr.rel (%p17) target = $region8
    $region5: #{tpu_custom_call.1} parent=1 // loop_body
      %s21 = ssub.s32 %s16, 1
      %s22 = ssub.s32 %s16, 2
      %s29 = sadd.s32 1, %s24
      %p30 = scmp.ge.s32.totalorder %s29, 2
      %s31 = scalar_select %p30, 0, %s29
      %s32 = sadd.s32 1, %s23
      %s33 = scalar_select %p30, %s32, %s23
      %p34 = scmp.ge.s32.totalorder %s33, 1
      %s35 = scalar_select %p34, 0, %s33
      %s36 = ssub.s32 %s23, %s35
      %p37 = scmp.eq.s32.totalorder %s36, 0
      %s39 = sadd.s32 %s38, 1
      %s40 = scalar_select %p37, %s38, %s39
      %p43 = pneg %p37
      %p44 = scmp.eq.s32.totalorder %s16, 1
      %p45 = por %p43, %p44
      %p46 = scmp.ne.s32.totalorder %s38, %s41
      %p47 = scmp.eq.s32.totalorder %s16, 0
      %p48 = por %p46, %p47
      %p49 = scmp.ne.s32.totalorder %s38, %s41
      %p50 = scmp.eq.s32.totalorder %s21, 1
      %p51 = por %p49, %p50
      %p52 = scmp.ne.s32.totalorder %s41, %s42
      %p53 = scmp.eq.s32.totalorder %s21, 0
      %p54 = por %p52, %p53
      %p55 = scmp.ne.s32.totalorder %s41, %s42
      %p56 = scmp.eq.s32.totalorder %s22, 1
      %p57 = por %p55, %p56
      %p59 = scmp.ne.s32.totalorder %s42, %s58
      %p60 = scmp.eq.s32.totalorder %s22, 0
      %p61 = por %p59, %p60
      %s62 = ssub.s32 %s24, %s31
      %p63 = scmp.eq.s32.totalorder %s62, 0
      %s65 = sadd.s32 %s64, 1
      %s66 = scalar_select %p63, %s64, %s65
      %p69 = pneg %p63
      %p70 = scmp.eq.s32.totalorder %s16, 1
      %p71 = por %p69, %p70
      %p72 = scmp.ne.s32.totalorder %s64, %s67
      %p73 = scmp.eq.s32.totalorder %s16, 0
      %p74 = por %p72, %p73
      %p75 = scmp.ne.s32.totalorder %s64, %s67
      %p76 = scmp.eq.s32.totalorder %s21, 1
      %p77 = por %p75, %p76
      %p78 = scmp.ne.s32.totalorder %s67, %s68
      %p79 = scmp.eq.s32.totalorder %s21, 0
      %p80 = por %p78, %p79
      %p81 = scmp.ne.s32.totalorder %s67, %s68
      %p82 = scmp.eq.s32.totalorder %s22, 1
      %p83 = por %p81, %p82
      %p85 = scmp.ne.s32.totalorder %s68, %s84
      %p86 = scmp.eq.s32.totalorder %s22, 0
      %p87 = por %p85, %p86
      %s89 = sadd.s32 %s88, 1
      %p92 = scmp.eq.s32.totalorder %s16, 1
      %p93 = scmp.ne.s32.totalorder %s88, %s90
      %p94 = scmp.eq.s32.totalorder %s16, 0
      %p95 = por %p93, %p94
      %p96 = scmp.ne.s32.totalorder %s88, %s90
      %p97 = scmp.eq.s32.totalorder %s21, 1
      %p98 = por %p96, %p97
      %p99 = scmp.ne.s32.totalorder %s90, %s91
      %p100 = scmp.eq.s32.totalorder %s21, 0
      %p101 = por %p99, %p100
      %p102 = scmp.ne.s32.totalorder %s90, %s91
      %p103 = scmp.eq.s32.totalorder %s22, 1
      %p104 = por %p102, %p103
      %p106 = scmp.ne.s32.totalorder %s91, %s105
      %p107 = scmp.eq.s32.totalorder %s22, 0
      %p108 = por %p106, %p107
      %s109 = ssub.s32 %s23, %s35
      %s110 = ssub.s32 %s24, %s31
      %s111 = sor.u32 %s109, %s110
      %p112 = scmp.eq.s32.totalorder %s111, 0
      %s114 = sadd.s32 %s113, 1
      %s115 = scalar_select %p112, %s113, %s114
      %p118 = pneg %p112
      %p119 = scmp.eq.s32.totalorder %s16, 1
      %p120 = por %p118, %p119
      %p121 = scmp.ne.s32.totalorder %s113, %s116
      %p122 = scmp.eq.s32.totalorder %s16, 0
      %p123 = por %p121, %p122
      %p124 = scmp.ne.s32.totalorder %s113, %s116
      %p125 = scmp.eq.s32.totalorder %s21, 1
      %p126 = por %p124, %p125
      %p127 = scmp.ne.s32.totalorder %s116, %s117
      %p128 = scmp.eq.s32.totalorder %s21, 0
      %p129 = por %p127, %p128
      %p130 = scmp.ne.s32.totalorder %s116, %s117
      %p131 = scmp.eq.s32.totalorder %s22, 1
      %p132 = por %p130, %p131
      %p134 = scmp.ne.s32.totalorder %s117, %s133
      %p135 = scmp.eq.s32.totalorder %s22, 0
      %p136 = por %p134, %p135
      %p137 = scmp.le.s32.totalorder 1, %s16
      %p138 = scmp.lt.s32.totalorder %s16, 3
      %p139 = pnand %p137, %p138
      %p140 = pneg %p139
      // Predicated region
      $region9: #{tpu_custom_call.1} parent=5 // pred_check
        _
      $region10: #{tpu_custom_call.1} parent=5 // pred_check_branch
        %142 = sbr.rel (%p139) target = $region12
      $region11: #{tpu_custom_call.1} parent=5 // pred_region
        %s143 = ssub.s32 %s16, 1
        // Predicated region
        $region13: #{tpu_custom_call.1} parent=11 // pred_check
          %p144 = pneg %p54
        $region14: #{tpu_custom_call.1} parent=11 // pred_check_branch
          %146 = sbr.rel (%p144) target = $region16
        $region15: #{tpu_custom_call.1} parent=11 // pred_region
          %s148 = ssub.s32 512, 512
          %149 = vsyncadd [#allocation3], %s148
          %s150 = smul.addr %s25, 4
          %s151 = smul.addr %s150, 128
          %s152 = scalar_lea.hbm %s0, %s151
          %s154 = sshll.u32 [#allocation2], 4
          %s155 = int_to_ptr.vmem [resolvable:$true] %s154
          %157 = dma.hbm_to_vmem [thread:$0]  %s152, 512, %s155, [#allocation3]
        $region16: #{tpu_custom_call.1} parent=11 // pred_fallthru
          _
        // Predicated region
        $region17: #{tpu_custom_call.1} parent=11 // pred_check
          %p158 = pneg %p101
        $region18: #{tpu_custom_call.1} parent=11 // pred_check_branch
          %160 = sbr.rel (%p158) target = $region20
        $region19: #{tpu_custom_call.1} parent=11 // pred_region
          %s162 = ssub.s32 64, 64
          %163 = vsyncadd [#allocation6], %s162
          %s165 = sshll.u32 [#allocation7], 4
          %s166 = int_to_ptr.vmem [resolvable:$true] %s165
          %168 = dma.hbm_to_vmem [thread:$0]  %s2, 64, %s166, [#allocation6]
        $region20: #{tpu_custom_call.1} parent=11 // pred_fallthru
          _
      $region12: #{tpu_custom_call.1} parent=5 // pred_fallthru
        _
      %p169 = scmp.lt.s32.totalorder %s16, 2
      // Predicated region
      $region21: #{tpu_custom_call.1} parent=5 // pred_check
        %p170 = pneg %p169
      $region22: #{tpu_custom_call.1} parent=5 // pred_check_branch
        %172 = sbr.rel (%p170) target = $region24
      $region23: #{tpu_custom_call.1} parent=5 // pred_region
        // Predicated region
        $region25: #{tpu_custom_call.1} parent=23 // pred_check
          %p173 = pneg %p74
        $region26: #{tpu_custom_call.1} parent=23 // pred_check_branch
          %175 = sbr.rel (%p173) target = $region28
        $region27: #{tpu_custom_call.1} parent=23 // pred_region
          %s176 = sand.u32 %s16, 1
          %s177 = scalar_lea.sflag [#allocation6], %s176
          %s178 = sand.u32 %s64, 1
          %s179 = smul.addr %s178, 1024
          %s180 = scalar_lea.vmem [#allocation5], %s179
          %s181 = smul.u32 2, %s24
          %s183 = ssub.s32 16384, 16384
          %184 = vsyncadd %s177, %s183
          %s185 = smul.addr %s181, 128
          %s186 = scalar_lea.hbm %s1, %s185
          %s187 = sshll.u32 %s180, 4
          %s188 = int_to_ptr.vmem [resolvable:$true] %s187
          %193 = dma.hbm_to_vmem [thread:$0]  %s186, 16384, %s188, %s177, 512, 256, 16
        $region28: #{tpu_custom_call.1} parent=23 // pred_fallthru
          _
      $region24: #{tpu_custom_call.1} parent=5 // pred_fallthru
        _
      %p194 = scmp.le.s32.totalorder 1, %s16
      %p195 = scmp.lt.s32.totalorder %s16, 3
      %p196 = pnand %p194, %p195
      %p197 = pneg %p196
      // Predicated region
      $region29: #{tpu_custom_call.1} parent=5 // pred_check
        _
      $region30: #{tpu_custom_call.1} parent=5 // pred_check_branch
        %199 = sbr.rel (%p196) target = $region32
      $region31: #{tpu_custom_call.1} parent=5 // pred_region
        %s200 = ssub.s32 %s16, 1
        // Predicated region
        $region33: #{tpu_custom_call.1} parent=31 // pred_check
          %p201 = pneg %p54
        $region34: #{tpu_custom_call.1} parent=31 // pred_check_branch
          %203 = sbr.rel (%p201) target = $region36
        $region35: #{tpu_custom_call.1} parent=31 // pred_region
          %204 = dma.done [#allocation3], 512
        $region36: #{tpu_custom_call.1} parent=31 // pred_fallthru
          _
        %s205 = sand.u32 %s21, 1
        %s206 = scalar_lea.sflag [#allocation6], %s205
        %s207 = sand.u32 %s67, 1
        %s208 = smul.addr %s207, 1024
        %s209 = scalar_lea.vmem [#allocation5], %s208
        // Predicated region
        $region37: #{tpu_custom_call.1} parent=31 // pred_check
          %p210 = pneg %p80
        $region38: #{tpu_custom_call.1} parent=31 // pred_check_branch
          %212 = sbr.rel (%p210) target = $region40
        $region39: #{tpu_custom_call.1} parent=31 // pred_region
          %213 = dma.done %s206, 16384
        $region40: #{tpu_custom_call.1} parent=31 // pred_fallthru
          _
        // Predicated region
        $region41: #{tpu_custom_call.1} parent=31 // pred_check
          %p214 = pneg %p101
        $region42: #{tpu_custom_call.1} parent=31 // pred_check_branch
          %216 = sbr.rel (%p214) target = $region44
        $region43: #{tpu_custom_call.1} parent=31 // pred_region
          %217 = dma.done [#allocation6], 64
        $region44: #{tpu_custom_call.1} parent=31 // pred_fallthru
          _
        %p218 = pneg %p54
        %p219 = pneg %p51
        %s220 = sand.u32 %s21, 1
        %s221 = scalar_lea.sflag [#allocation6], %s220
        %s222 = sand.u32 %s67, 1
        %s223 = smul.addr %s222, 1024
        %s224 = scalar_lea.vmem [#allocation5], %s223
        %p225 = pneg %p80
        %p226 = pneg %p77
        %p227 = pneg %p101
        %p228 = pneg %p98
        %p229 = pneg %p129
        %p230 = pneg %p126
        %s231 = sand.u32 %s116, 1
        %s232 = scalar_lea.sflag [#allocation4], %s231
        %s233 = sand.u32 %s116, 1
        %s234 = smul.addr %s233, 16
        %s235 = scalar_lea.vmem [#allocation8], %s234
        %s236 = smul.u32 2, %s26
        %s237 = smul.u32 2, %s26
        %s238 = smul.u32 %s26, 256
        %v239 = vld [vmem:[#allocation2] sm:$0xff]
        %v240 = vld [vmem:[#allocation2 + $0x8] sm:$0xff]
        %v241 = vld [vmem:[#allocation2 + $0x10] sm:$0xff]
        %v242 = vld [vmem:[#allocation2 + $0x18] sm:$0xff]
        %v243 = vld [vmem:[%s209] sm:$0xff]
        %v244 = vld [vmem:[%s209 + $0x8] sm:$0xff]
        %v245 = vld [vmem:[%s209 + $0x10] sm:$0xff]
        %v246 = vld [vmem:[%s209 + $0x18] sm:$0xff]
        %v247 = vld [vmem:[%s209 + $0x20] sm:$0xff]
        %v248 = vld [vmem:[%s209 + $0x28] sm:$0xff]
        %v249 = vld [vmem:[%s209 + $0x30] sm:$0xff]
        %v250 = vld [vmem:[%s209 + $0x38] sm:$0xff]
        %v251 = vld [vmem:[%s209 + $0x40] sm:$0xff]
        %v252 = vld [vmem:[%s209 + $0x48] sm:$0xff]
        %v253 = vld [vmem:[%s209 + $0x50] sm:$0xff]
        %v254 = vld [vmem:[%s209 + $0x58] sm:$0xff]
        %v255 = vld [vmem:[%s209 + $0x60] sm:$0xff]
        %v256 = vld [vmem:[%s209 + $0x68] sm:$0xff]
        %v257 = vld [vmem:[%s209 + $0x70] sm:$0xff]
        %v258 = vld [vmem:[%s209 + $0x78] sm:$0xff]
        %v259 = vld [vmem:[%s209 + $0x80] sm:$0xff]
        %v260 = vld [vmem:[%s209 + $0x88] sm:$0xff]
        %v261 = vld [vmem:[%s209 + $0x90] sm:$0xff]
        %v262 = vld [vmem:[%s209 + $0x98] sm:$0xff]
        %v263 = vld [vmem:[%s209 + $0xa0] sm:$0xff]
        %v264 = vld [vmem:[%s209 + $0xa8] sm:$0xff]
        %v265 = vld [vmem:[%s209 + $0xb0] sm:$0xff]
        %v266 = vld [vmem:[%s209 + $0xb8] sm:$0xff]
        %v267 = vld [vmem:[%s209 + $0xc0] sm:$0xff]
        %v268 = vld [vmem:[%s209 + $0xc8] sm:$0xff]
        %v269 = vld [vmem:[%s209 + $0xd0] sm:$0xff]
        %v270 = vld [vmem:[%s209 + $0xd8] sm:$0xff]
        %v271 = vld [vmem:[%s209 + $0xe0] sm:$0xff]
        %v272 = vld [vmem:[%s209 + $0xe8] sm:$0xff]
        %v273 = vld [vmem:[%s209 + $0xf0] sm:$0xff]
        %v274 = vld [vmem:[%s209 + $0xf8] sm:$0xff]
        %v275 = vld [vmem:[%s209 + $0x100] sm:$0xff]
        %v276 = vld [vmem:[%s209 + $0x108] sm:$0xff]
        %v277 = vld [vmem:[%s209 + $0x110] sm:$0xff]
        %v278 = vld [vmem:[%s209 + $0x118] sm:$0xff]
        %v279 = vld [vmem:[%s209 + $0x120] sm:$0xff]
        %v280 = vld [vmem:[%s209 + $0x128] sm:$0xff]
        %v281 = vld [vmem:[%s209 + $0x130] sm:$0xff]
        %v282 = vld [vmem:[%s209 + $0x138] sm:$0xff]
        %v283 = vld [vmem:[%s209 + $0x140] sm:$0xff]
        %v284 = vld [vmem:[%s209 + $0x148] sm:$0xff]
        %v285 = vld [vmem:[%s209 + $0x150] sm:$0xff]
        %v286 = vld [vmem:[%s209 + $0x158] sm:$0xff]
        %v287 = vld [vmem:[%s209 + $0x160] sm:$0xff]
        %v288 = vld [vmem:[%s209 + $0x168] sm:$0xff]
        %v289 = vld [vmem:[%s209 + $0x170] sm:$0xff]
        %v290 = vld [vmem:[%s209 + $0x178] sm:$0xff]
        %v291 = vld [vmem:[%s209 + $0x180] sm:$0xff]
        %v292 = vld [vmem:[%s209 + $0x188] sm:$0xff]
        %v293 = vld [vmem:[%s209 + $0x190] sm:$0xff]
        %v294 = vld [vmem:[%s209 + $0x198] sm:$0xff]
        %v295 = vld [vmem:[%s209 + $0x1a0] sm:$0xff]
        %v296 = vld [vmem:[%s209 + $0x1a8] sm:$0xff]
        %v297 = vld [vmem:[%s209 + $0x1b0] sm:$0xff]
        %v298 = vld [vmem:[%s209 + $0x1b8] sm:$0xff]
        %v299 = vld [vmem:[%s209 + $0x1c0] sm:$0xff]
        %v300 = vld [vmem:[%s209 + $0x1c8] sm:$0xff]
        %v301 = vld [vmem:[%s209 + $0x1d0] sm:$0xff]
        %v302 = vld [vmem:[%s209 + $0x1d8] sm:$0xff]
        %v303 = vld [vmem:[%s209 + $0x1e0] sm:$0xff]
        %v304 = vld [vmem:[%s209 + $0x1e8] sm:$0xff]
        %v305 = vld [vmem:[%s209 + $0x1f0] sm:$0xff]
        %v306 = vld [vmem:[%s209 + $0x1f8] sm:$0xff]
        %v307 = vld [vmem:[%s209 + $0x200] sm:$0xff]
        %v308 = vld [vmem:[%s209 + $0x208] sm:$0xff]
        %v309 = vld [vmem:[%s209 + $0x210] sm:$0xff]
        %v310 = vld [vmem:[%s209 + $0x218] sm:$0xff]
        %v311 = vld [vmem:[%s209 + $0x220] sm:$0xff]
        %v312 = vld [vmem:[%s209 + $0x228] sm:$0xff]
        %v313 = vld [vmem:[%s209 + $0x230] sm:$0xff]
        %v314 = vld [vmem:[%s209 + $0x238] sm:$0xff]
        %v315 = vld [vmem:[%s209 + $0x240] sm:$0xff]
        %v316 = vld [vmem:[%s209 + $0x248] sm:$0xff]
        %v317 = vld [vmem:[%s209 + $0x250] sm:$0xff]
        %v318 = vld [vmem:[%s209 + $0x258] sm:$0xff]
        %v319 = vld [vmem:[%s209 + $0x260] sm:$0xff]
        %v320 = vld [vmem:[%s209 + $0x268] sm:$0xff]
        %v321 = vld [vmem:[%s209 + $0x270] sm:$0xff]
        %v322 = vld [vmem:[%s209 + $0x278] sm:$0xff]
        %v323 = vld [vmem:[%s209 + $0x280] sm:$0xff]
        %v324 = vld [vmem:[%s209 + $0x288] sm:$0xff]
        %v325 = vld [vmem:[%s209 + $0x290] sm:$0xff]
        %v326 = vld [vmem:[%s209 + $0x298] sm:$0xff]
        %v327 = vld [vmem:[%s209 + $0x2a0] sm:$0xff]
        %v328 = vld [vmem:[%s209 + $0x2a8] sm:$0xff]
        %v329 = vld [vmem:[%s209 + $0x2b0] sm:$0xff]
        %v330 = vld [vmem:[%s209 + $0x2b8] sm:$0xff]
        %v331 = vld [vmem:[%s209 + $0x2c0] sm:$0xff]
        %v332 = vld [vmem:[%s209 + $0x2c8] sm:$0xff]
        %v333 = vld [vmem:[%s209 + $0x2d0] sm:$0xff]
        %v334 = vld [vmem:[%s209 + $0x2d8] sm:$0xff]
        %v335 = vld [vmem:[%s209 + $0x2e0] sm:$0xff]
        %v336 = vld [vmem:[%s209 + $0x2e8] sm:$0xff]
        %v337 = vld [vmem:[%s209 + $0x2f0] sm:$0xff]
        %v338 = vld [vmem:[%s209 + $0x2f8] sm:$0xff]
        %v339 = vld [vmem:[%s209 + $0x300] sm:$0xff]
        %v340 = vld [vmem:[%s209 + $0x308] sm:$0xff]
        %v341 = vld [vmem:[%s209 + $0x310] sm:$0xff]
        %v342 = vld [vmem:[%s209 + $0x318] sm:$0xff]
        %v343 = vld [vmem:[%s209 + $0x320] sm:$0xff]
        %v344 = vld [vmem:[%s209 + $0x328] sm:$0xff]
        %v345 = vld [vmem:[%s209 + $0x330] sm:$0xff]
        %v346 = vld [vmem:[%s209 + $0x338] sm:$0xff]
        %v347 = vld [vmem:[%s209 + $0x340] sm:$0xff]
        %v348 = vld [vmem:[%s209 + $0x348] sm:$0xff]
        %v349 = vld [vmem:[%s209 + $0x350] sm:$0xff]
        %v350 = vld [vmem:[%s209 + $0x358] sm:$0xff]
        %v351 = vld [vmem:[%s209 + $0x360] sm:$0xff]
        %v352 = vld [vmem:[%s209 + $0x368] sm:$0xff]
        %v353 = vld [vmem:[%s209 + $0x370] sm:$0xff]
        %v354 = vld [vmem:[%s209 + $0x378] sm:$0xff]
        %v355 = vld [vmem:[%s209 + $0x380] sm:$0xff]
        %v356 = vld [vmem:[%s209 + $0x388] sm:$0xff]
        %v357 = vld [vmem:[%s209 + $0x390] sm:$0xff]
        %v358 = vld [vmem:[%s209 + $0x398] sm:$0xff]
        %v359 = vld [vmem:[%s209 + $0x3a0] sm:$0xff]
        %v360 = vld [vmem:[%s209 + $0x3a8] sm:$0xff]
        %v361 = vld [vmem:[%s209 + $0x3b0] sm:$0xff]
        %v362 = vld [vmem:[%s209 + $0x3b8] sm:$0xff]
        %v363 = vld [vmem:[%s209 + $0x3c0] sm:$0xff]
        %v364 = vld [vmem:[%s209 + $0x3c8] sm:$0xff]
        %v365 = vld [vmem:[%s209 + $0x3d0] sm:$0xff]
        %v366 = vld [vmem:[%s209 + $0x3d8] sm:$0xff]
        %v367 = vld [vmem:[%s209 + $0x3e0] sm:$0xff]
        %v368 = vld [vmem:[%s209 + $0x3e8] sm:$0xff]
        %v369 = vld [vmem:[%s209 + $0x3f0] sm:$0xff]
        %v370 = vld [vmem:[%s209 + $0x3f8] sm:$0xff]
        %s371 = sshra.s32 %s238, 7
        %s372 = sand.u32 %s238, 127
        %s373 = scalar_lea.vmem [#allocation7], %s371
        %v374 = vld [vmem:[%s373] sm:$0x3]
        %v376 = vlaneseq
        %v377 = vshrl.u32 %v376, 7
        %v378 = vsub.s32 0, %v377
        %v379 = vrot.slane %v374, %v378
        %v380 = vlaneseq
        %v381 = vshrl.u32 %v380, 7
        %v382 = vsub.s32 1, %v381
        %v383 = vrot.slane %v374, %v382
        %386 = vmatprep.subr.mxu0 %v244
        %387 = vmatpush1.msra.mxu0 %v243
        %388 = vmatprep.subr.mxu0 %v246
        %389 = vmatpush1.msra.mxu0 %v245
        %390 = vmatprep.subr.mxu0 %v248
        %391 = vmatpush1.msra.mxu0 %v247
        %392 = vmatprep.subr.mxu0 %v250
        %393 = vmatpush1.msra.mxu0 %v249
        %394 = vmatprep.subr.mxu0 %v252
        %395 = vmatpush1.msra.mxu0 %v251
        %396 = vmatprep.subr.mxu0 %v254
        %397 = vmatpush1.msra.mxu0 %v253
        %398 = vmatprep.subr.mxu0 %v256
        %399 = vmatpush1.msra.mxu0 %v255
        %400 = vmatprep.subr.mxu0 %v258
        %401 = vmatpush1.msra.mxu0 %v257
        %402 = vmatprep.subr.mxu0 %v260
        %403 = vmatpush1.msra.mxu0 %v259
        %404 = vmatprep.subr.mxu0 %v262
        %405 = vmatpush1.msra.mxu0 %v261
        %406 = vmatprep.subr.mxu0 %v264
        %407 = vmatpush1.msra.mxu0 %v263
        %408 = vmatprep.subr.mxu0 %v266
        %409 = vmatpush1.msra.mxu0 %v265
        %410 = vmatprep.subr.mxu0 %v268
        %411 = vmatpush1.msra.mxu0 %v267
        %412 = vmatprep.subr.mxu0 %v270
        %413 = vmatpush1.msra.mxu0 %v269
        %414 = vmatprep.subr.mxu0 %v272
        %415 = vmatpush1.msra.mxu0 %v271
        %416 = vmatprep.subr.mxu0 %v274
        %417 = vmatpush1.msra.mxu0 %v273
        %418 = vmatprep.subr.mxu0 %v276
        %419 = vmatpush1.msra.mxu0 %v275
        %420 = vmatprep.subr.mxu0 %v278
        %421 = vmatpush1.msra.mxu0 %v277
        %422 = vmatprep.subr.mxu0 %v280
        %423 = vmatpush1.msra.mxu0 %v279
        %424 = vmatprep.subr.mxu0 %v282
        %425 = vmatpush1.msra.mxu0 %v281
        %426 = vmatprep.subr.mxu0 %v284
        %427 = vmatpush1.msra.mxu0 %v283
        %428 = vmatprep.subr.mxu0 %v286
        %429 = vmatpush1.msra.mxu0 %v285
        %430 = vmatprep.subr.mxu0 %v288
        %431 = vmatpush1.msra.mxu0 %v287
        %432 = vmatprep.subr.mxu0 %v290
        %433 = vmatpush1.msra.mxu0 %v289
        %434 = vmatprep.subr.mxu0 %v292
        %435 = vmatpush1.msra.mxu0 %v291
        %436 = vmatprep.subr.mxu0 %v294
        %437 = vmatpush1.msra.mxu0 %v293
        %438 = vmatprep.subr.mxu0 %v296
        %439 = vmatpush1.msra.mxu0 %v295
        %440 = vmatprep.subr.mxu0 %v298
        %441 = vmatpush1.msra.mxu0 %v297
        %442 = vmatprep.subr.mxu0 %v300
        %443 = vmatpush1.msra.mxu0 %v299
        %444 = vmatprep.subr.mxu0 %v302
        %445 = vmatpush1.msra.mxu0 %v301
        %446 = vmatprep.subr.mxu0 %v304
        %447 = vmatpush1.msra.mxu0 %v303
        %448 = vmatprep.subr.mxu0 %v306
        %449 = vmatpush1.msra.mxu0 %v305
        %450 = vmatprep.mubr.f32.mxu0 %v240
        %451 = vmatmul.mubr.f32.gmra.mrb[0].mxu0 %v239
        %v452 = vpop.f32.mrb[0].mxu0
        %v453 = vadd.f32 %v379, %v452
        %v454 = vpop.f32.mrb[0].mxu0
        %v455 = vadd.f32 %v383, %v454
        %456 = vdwg.mxu0
        %457 = vmatprep.subr.mxu0 %v308
        %458 = vmatpush1.msra.mxu0 %v307
        %459 = vmatprep.subr.mxu0 %v310
        %460 = vmatpush1.msra.mxu0 %v309
        %461 = vmatprep.subr.mxu0 %v312
        %462 = vmatpush1.msra.mxu0 %v311
        %463 = vmatprep.subr.mxu0 %v314
        %464 = vmatpush1.msra.mxu0 %v313
        %465 = vmatprep.subr.mxu0 %v316
        %466 = vmatpush1.msra.mxu0 %v315
        %467 = vmatprep.subr.mxu0 %v318
        %468 = vmatpush1.msra.mxu0 %v317
        %469 = vmatprep.subr.mxu0 %v320
        %470 = vmatpush1.msra.mxu0 %v319
        %471 = vmatprep.subr.mxu0 %v322
        %472 = vmatpush1.msra.mxu0 %v321
        %473 = vmatprep.subr.mxu0 %v324
        %474 = vmatpush1.msra.mxu0 %v323
        %475 = vmatprep.subr.mxu0 %v326
        %476 = vmatpush1.msra.mxu0 %v325
        %477 = vmatprep.subr.mxu0 %v328
        %478 = vmatpush1.msra.mxu0 %v327
        %479 = vmatprep.subr.mxu0 %v330
        %480 = vmatpush1.msra.mxu0 %v329
        %481 = vmatprep.subr.mxu0 %v332
        %482 = vmatpush1.msra.mxu0 %v331
        %483 = vmatprep.subr.mxu0 %v334
        %484 = vmatpush1.msra.mxu0 %v333
        %485 = vmatprep.subr.mxu0 %v336
        %486 = vmatpush1.msra.mxu0 %v335
        %487 = vmatprep.subr.mxu0 %v338
        %488 = vmatpush1.msra.mxu0 %v337
        %489 = vmatprep.subr.mxu0 %v340
        %490 = vmatpush1.msra.mxu0 %v339
        %491 = vmatprep.subr.mxu0 %v342
        %492 = vmatpush1.msra.mxu0 %v341
        %493 = vmatprep.subr.mxu0 %v344
        %494 = vmatpush1.msra.mxu0 %v343
        %495 = vmatprep.subr.mxu0 %v346
        %496 = vmatpush1.msra.mxu0 %v345
        %497 = vmatprep.subr.mxu0 %v348
        %498 = vmatpush1.msra.mxu0 %v347
        %499 = vmatprep.subr.mxu0 %v350
        %500 = vmatpush1.msra.mxu0 %v349
        %501 = vmatprep.subr.mxu0 %v352
        %502 = vmatpush1.msra.mxu0 %v351
        %503 = vmatprep.subr.mxu0 %v354
        %504 = vmatpush1.msra.mxu0 %v353
        %505 = vmatprep.subr.mxu0 %v356
        %506 = vmatpush1.msra.mxu0 %v355
        %507 = vmatprep.subr.mxu0 %v358
        %508 = vmatpush1.msra.mxu0 %v357
        %509 = vmatprep.subr.mxu0 %v360
        %510 = vmatpush1.msra.mxu0 %v359
        %511 = vmatprep.subr.mxu0 %v362
        %512 = vmatpush1.msra.mxu0 %v361
        %513 = vmatprep.subr.mxu0 %v364
        %514 = vmatpush1.msra.mxu0 %v363
        %515 = vmatprep.subr.mxu0 %v366
        %516 = vmatpush1.msra.mxu0 %v365
        %517 = vmatprep.subr.mxu0 %v368
        %518 = vmatpush1.msra.mxu0 %v367
        %519 = vmatprep.subr.mxu0 %v370
        %520 = vmatpush1.msra.mxu0 %v369
        %521 = vmatprep.mubr.f32.mxu0 %v242
        %522 = vmatmul.mubr.f32.gmra.mrb[0].mxu0 %v241
        %v523 = vpop.f32.mrb[0].mxu0
        %v524 = vadd.f32 %v453, %v523
        %v525 = vpop.f32.mrb[0].mxu0
        %v526 = vadd.f32 %v455, %v525
        %527 = vdwg.mxu0
        %v528 = vmax.f32 %v524, 0.0
        %v529 = vmax.f32 %v526, 0.0
        %s530 = smul.addr %s371, 8
        %s531 = scalar_lea.vmem [#allocation2], %s530
        %v532 = vld [vmem:[%s531] sm:$0xff]
        %v533 = vld [vmem:[%s531 + $0x8] sm:$0xff]
        %v534 = vadd.f32 %v528, %v532
        %v535 = vadd.f32 %v529, %v533
        %v536 = vmax.f32 %v534, 0.0
        %v537 = vmax.f32 %v535, 0.0
        %538 = vst [vmem:[%s235] sm:$0xff] %v536
        %539 = vst [vmem:[%s235 + $0x8] sm:$0xff] %v537
        %s540 = sand.u32 %s116, 1
        %s541 = scalar_lea.sflag [#allocation4], %s540
        %s542 = sand.u32 %s116, 1
        %s543 = smul.addr %s542, 16
        %s544 = scalar_lea.vmem [#allocation8], %s543
        // Predicated region
        $region45: #{tpu_custom_call.1} parent=31 // pred_check
          %p545 = pneg %p126
        $region46: #{tpu_custom_call.1} parent=31 // pred_check_branch
          %547 = sbr.rel (%p545) target = $region48
        $region47: #{tpu_custom_call.1} parent=31 // pred_region
          %s548 = smul.u32 2, %s26
          %s550 = ssub.s32 256, 256
          %551 = vsyncadd %s541, %s550
          %s552 = smul.addr %s25, 4
          %s553 = sadd.s32 %s548, %s552
          %s554 = smul.addr %s553, 128
          %s555 = scalar_lea.hbm %s3, %s554
          %s557 = sshll.u32 %s544, 4
          %s558 = int_to_ptr.vmem [resolvable:$true] %s557
          %560 = dma.vmem_to_hbm [thread:$0]  %s558, 256, %s555, %s541
        $region48: #{tpu_custom_call.1} parent=31 // pred_fallthru
          _
      $region32: #{tpu_custom_call.1} parent=5 // pred_fallthru
        _
      %p561 = scmp.le.s32.totalorder 2, %s16
      // Predicated region
      $region49: #{tpu_custom_call.1} parent=5 // pred_check
        %p562 = pneg %p561
      $region50: #{tpu_custom_call.1} parent=5 // pred_check_branch
        %564 = sbr.rel (%p562) target = $region52
      $region51: #{tpu_custom_call.1} parent=5 // pred_region
        %s565 = ssub.s32 %s16, 2
        // Predicated region
        $region53: #{tpu_custom_call.1} parent=51 // pred_check
          %p566 = pneg %p132
        $region54: #{tpu_custom_call.1} parent=51 // pred_check_branch
          %568 = sbr.rel (%p566) target = $region56
        $region55: #{tpu_custom_call.1} parent=51 // pred_region
          %s569 = sand.u32 %s117, 1
          %s570 = scalar_lea.sflag [#allocation4], %s569
          %s571 = sand.u32 %s117, 1
          %s572 = smul.addr %s571, 16
          %s573 = scalar_lea.vmem [#allocation8], %s572
          %574 = dma.done %s570, 256
        $region56: #{tpu_custom_call.1} parent=51 // pred_fallthru
          _
      $region52: #{tpu_custom_call.1} parent=5 // pred_fallthru
        _
    $region6: #{tpu_custom_call.1} parent=1 // loop_footer
      %s20 = sadd.s32 1, %s16
    $region7: #{tpu_custom_call.1} parent=1 // loop_footer_branch
      %15 = sbr.rel target = $region3
    $region8: #{tpu_custom_call.1} parent=1 // loop_exit
      _
    %575 = vsyncpa [#allocation3], 1
    %s576 = scalar_lea.sflag [#allocation3], 1
    %577 = vsyncpa %s576, 1
    %578 = vsyncpa [#allocation6], 1
    %s579 = scalar_lea.sflag [#allocation6], 1
    %580 = vsyncpa %s579, 1
    %581 = vsyncpa [#allocation4], 1
    %s582 = scalar_lea.sflag [#allocation4], 1
    %583 = vsyncpa %s582, 1

</llo_original>
